<compile_context>
chip_gen: v6e
topology: v6e:2x2x1
jax: 0.10.0
libtpu: 0.0.40
codegen_flags: <defaults>
</compile_context>

<pallas_src>
import jax
import jax.numpy as jnp
from jax.experimental import pallas as pl
from jax.experimental.pallas import tpu as pltpu


def _round_up(x, m):
    return ((x + m - 1) // m) * m


def _pick_batch_tile(b):
    # Largest divisor of B that is <= 8 (even batch grid, no batch padding).
    for d in range(min(b, 8), 0, -1):
        if b % d == 0:
            return d
    return 1


def _make_se_kernel(inv_hw, n_chunks):
    def kernel(x_ref, w1t_ref, b1_ref, w2t_ref, b2_ref, o_ref, acc_ref):
        s = pl.program_id(1)

        @pl.when(s == 0)
        def _zero():
            acc_ref[...] = jnp.zeros_like(acc_ref)

        # Lane-preserving partial sum over this spatial tile: pure VALU adds of
        # 128-lane chunks; the single cross-lane reduce is deferred to the
        # epilogue. Cast to f32 after load (bf16 inputs stay bf16 over HBM).
        xb = x_ref[...]                                          # (tb, C, ts)
        part = xb[:, :, 0:128].astype(jnp.float32)
        for k in range(1, n_chunks):
            part = part + xb[:, :, k * 128:(k + 1) * 128].astype(jnp.float32)
        acc_ref[...] = acc_ref[...] + part                       # (tb, C, 128) f32

        @pl.when(s == pl.num_programs(1) - 1)
        def _epilogue():
            pooled = acc_ref[...].sum(axis=-1) * inv_hw          # (tb, C)
            h = jnp.dot(pooled, w1t_ref[...],
                        preferred_element_type=jnp.float32) + b1_ref[...]
            h = jnp.maximum(h, 0.0)                              # (tb, CrP)
            gate = jnp.dot(h, w2t_ref[...],
                           preferred_element_type=jnp.float32) + b2_ref[...]
            o_ref[0] = jax.nn.sigmoid(gate).astype(o_ref.dtype)  # (tb, CP)

    return kernel


def se_block(x, w1, b1, w2, b2):
    """x: (B, C, H, W) NCHW (f32 or bf16). Returns (B, C, 1, 1) gate like PyTorch."""
    B, C, H, W = x.shape
    Cr = w1.shape[0]
    HW = H * W
    itemsize = jnp.dtype(x.dtype).itemsize

    # ---- tiling choices --------------------------------------------------
    tb = _pick_batch_tile(B)
    # Spatial tile: multiple of 128, capped so the double-buffered x tile stays
    # well inside the scoped-VMEM budget on every generation (v7x: 64 MiB VMEM).
    ts_budget = max(128, ((8 * 1024 * 1024) // max(1, tb * C * itemsize)) // 128 * 128)
    ts = min(_round_up(HW, 128), 2048, ts_budget)
    HWp = _round_up(HW, ts)
    n_chunks = ts // 128
    nb = B // tb
    ns = HWp // ts

    # Pad the tiny FC weights to 128-wide so MXU tiles / output store are lane-dense.
    CrP = _round_up(Cr, 128)
    CP = _round_up(C, 128)

    x_flat = x.reshape(B, C, HW)
    if HWp != HW:
        # Zero padding keeps the pooled sum exact; divisor stays the true HW.
        x_flat = jnp.pad(x_flat, ((0, 0), (0, 0), (0, HWp - HW)))

    w1t = jnp.pad(w1.T.astype(jnp.float32), ((0, 0), (0, CrP - Cr)))       # (C, CrP)
    b1p = jnp.pad(b1.astype(jnp.float32), (0, CrP - Cr)).reshape(1, CrP)
    w2t = jnp.pad(w2.T.astype(jnp.float32), ((0, CrP - Cr), (0, CP - C)))  # (CrP, CP)
    b2p = jnp.pad(b2.astype(jnp.float32), (0, CP - C)).reshape(1, CP)

    # VMEM budget: double-buffered x tile + resident weights + output + scratch.
    x_tile_bytes = tb * C * ts * itemsize
    w_bytes = 4 * (C * CrP + CrP + CrP * CP + CP)
    out_bytes = tb * CP * 4
    acc_bytes = tb * C * 128 * 4
    vmem_limit = 2 * x_tile_bytes + 2 * w_bytes + 2 * out_bytes + acc_bytes
    vmem_limit = min(int(vmem_limit * 1.5) + (2 << 20), 64 * 1024 * 1024)

    kernel = _make_se_kernel(1.0 / HW, n_chunks)

    out = pl.pallas_call(
        kernel,
        out_shape=jax.ShapeDtypeStruct((nb, tb, CP), jnp.float32),
        grid=(nb, ns),
        in_specs=[
            pl.BlockSpec((tb, C, ts), lambda b, s: (b, 0, s)),   # streamed x tiles
            pl.BlockSpec((C, CrP), lambda b, s: (0, 0)),         # resident fc1 weight
            pl.BlockSpec((1, CrP), lambda b, s: (0, 0)),         # resident fc1 bias
            pl.BlockSpec((CrP, CP), lambda b, s: (0, 0)),        # resident fc2 weight
            pl.BlockSpec((1, CP), lambda b, s: (0, 0)),          # resident fc2 bias
        ],
        out_specs=pl.BlockSpec((1, tb, CP), lambda b, s: (b, 0, 0)),
        scratch_shapes=[pltpu.VMEM((tb, C, 128), jnp.float32)],
        compiler_params=pltpu.CompilerParams(
            dimension_semantics=("parallel", "arbitrary"),
            vmem_limit_bytes=vmem_limit,
        ),
    )(x_flat, w1t, b1p, w2t, b2p)

    gate = out.reshape(B * tb if nb * tb != B else B, CP)[:B, :C]
    return gate.astype(x.dtype).reshape(B, C, 1, 1)


def _ref_se_block(x, w1, b1, w2, b2):
    # Pure-JAX reference mirroring the PyTorch forward.
    xf = x.astype(jnp.float32)
    pooled = jnp.mean(xf, axis=(2, 3))                    # gap + squeeze -> (B, C)
    h = jnp.maximum(pooled @ w1.T.astype(jnp.float32) + b1, 0.0)
    s = jax.nn.sigmoid(h @ w2.T.astype(jnp.float32) + b2)
    return s.reshape(x.shape[0], x.shape[1], 1, 1)


if __name__ == "__main__":
    B, C, H, W = 2, 8, 16, 16
    reduction_ratio = 4
    Cr = C // reduction_ratio

    key = jax.random.PRNGKey(0)
    kx, k1, k2, k3, k4 = jax.random.split(key, 5)

    x = jax.random.normal(kx, (B, C, H, W), dtype=jnp.float32)

    # Deterministic init matching nn.Linear's uniform(-1/sqrt(fan_in), 1/sqrt(fan_in)).
    bound1 = 1.0 / (C ** 0.5)
    w1 = jax.random.uniform(k1, (Cr, C), minval=-bound1, maxval=bound1, dtype=jnp.float32)
    b1 = jax.random.uniform(k2, (Cr,), minval=-bound1, maxval=bound1, dtype=jnp.float32)
    bound2 = 1.0 / (Cr ** 0.5)
    w2 = jax.random.uniform(k3, (C, Cr), minval=-bound2, maxval=bound2, dtype=jnp.float32)
    b2 = jax.random.uniform(k4, (C,), minval=-bound2, maxval=bound2, dtype=jnp.float32)

    out = se_block(x, w1, b1, w2, b2)
    out = jax.block_until_ready(out)

    ref = _ref_se_block(x, w1, b1, w2, b2)
    assert out.shape == (B, C, 1, 1)
    assert jnp.allclose(out.astype(jnp.float32), ref, atol=1e-5, rtol=1e-5)

    print("KERNEL_OK")
</pallas_src>

<mosaic_0001>
module attributes {stable_mosaic.version = 11 : i64} {
  func.func @kernel(%arg0: i32, %arg1: i32, %arg2: memref<2x8x256xf32, #tpu.memory_space<vmem>>, %arg3: memref<8x128xf32, #tpu.memory_space<vmem>>, %arg4: memref<1x128xf32, #tpu.memory_space<vmem>>, %arg5: memref<128x128xf32, #tpu.memory_space<vmem>>, %arg6: memref<1x128xf32, #tpu.memory_space<vmem>>, %arg7: memref<1x2x128xf32, #tpu.memory_space<vmem>>, %arg8: memref<2x8x128xf32, #tpu.memory_space<vmem>>) attributes {dimension_semantics = [#tpu.dimension_semantics<parallel>, #tpu.dimension_semantics<arbitrary>], iteration_bounds = array<i64: 1, 1>, scalar_prefetch = 0 : i64, scratch_operands = 1 : i64, tpu.core_type = #tpu.core_type<tc>, window_params = [{transform_indices = @transform_0, window_bounds = array<i64: 2, 8, 256>}, {pipeline_mode = #tpu.pipeline_mode<synchronous>, transform_indices = @transform_1, window_bounds = array<i64: 8, 128>}, {pipeline_mode = #tpu.pipeline_mode<synchronous>, transform_indices = @transform_2, window_bounds = array<i64: 1, 128>}, {pipeline_mode = #tpu.pipeline_mode<synchronous>, transform_indices = @transform_3, window_bounds = array<i64: 128, 128>}, {pipeline_mode = #tpu.pipeline_mode<synchronous>, transform_indices = @transform_4, window_bounds = array<i64: 1, 128>}, {transform_indices = @transform_5, window_bounds = array<i64: 1, 2, 128>}]} {
    %c0_i32 = arith.constant 0 : i32
    %0 = arith.cmpi eq, %arg1, %c0_i32 : i32
    %1 = arith.extui %0 : i1 to i32
    %c0_i32_0 = arith.constant 0 : i32
    %2 = arith.cmpi ne, %1, %c0_i32_0 : i32
    scf.if %2 {
      %cst = arith.constant 0.000000e+00 : f32
      %13 = vector.broadcast %cst : f32 to vector<2x8x128xf32>
      %c0_11 = arith.constant 0 : index
      %c0_12 = arith.constant 0 : index
      %c0_13 = arith.constant 0 : index
      %14 = vector.load %arg8[%c0_11, %c0_12, %c0_13] : memref<2x8x128xf32, #tpu.memory_space<vmem>>, vector<2x8x128xf32>
      tpu.vector_store %arg8[%c0_11, %c0_12, %c0_13], %13 {strides = array<i32>} : memref<2x8x128xf32, #tpu.memory_space<vmem>>, vector<2x8x128xf32>,
    } else {
    }
    %c0 = arith.constant 0 : index
    %c0_1 = arith.constant 0 : index
    %c0_2 = arith.constant 0 : index
    %3 = vector.load %arg2[%c0, %c0_1, %c0_2] : memref<2x8x256xf32, #tpu.memory_space<vmem>>, vector<2x8x256xf32>
    %4 = vector.extract_strided_slice %3 {offsets = [0, 0, 0], sizes = [2, 8, 128], strides = [1, 1, 1]} : vector<2x8x256xf32> to vector<2x8x128xf32>
    %5 = vector.extract_strided_slice %3 {offsets = [0, 0, 128], sizes = [2, 8, 128], strides = [1, 1, 1]} : vector<2x8x256xf32> to vector<2x8x128xf32>
    %6 = arith.addf %4, %5 : vector<2x8x128xf32>
    %c0_3 = arith.constant 0 : index
    %c0_4 = arith.constant 0 : index
    %c0_5 = arith.constant 0 : index
    %7 = vector.load %arg8[%c0_3, %c0_4, %c0_5] : memref<2x8x128xf32, #tpu.memory_space<vmem>>, vector<2x8x128xf32>
    %8 = arith.addf %7, %6 : vector<2x8x128xf32>
    %c0_6 = arith.constant 0 : index
    %c0_7 = arith.constant 0 : index
    %c0_8 = arith.constant 0 : index
    %9 = vector.load %arg8[%c0_6, %c0_7, %c0_8] : memref<2x8x128xf32, #tpu.memory_space<vmem>>, vector<2x8x128xf32>
    tpu.vector_store %arg8[%c0_6, %c0_7, %c0_8], %8 {strides = array<i32>} : memref<2x8x128xf32, #tpu.memory_space<vmem>>, vector<2x8x128xf32>,
    %c0_i32_9 = arith.constant 0 : i32
    %10 = arith.cmpi eq, %arg1, %c0_i32_9 : i32
    %11 = arith.extui %10 : i1 to i32
    %c0_i32_10 = arith.constant 0 : i32
    %12 = arith.cmpi ne, %11, %c0_i32_10 : i32
    scf.if %12 {
      %c0_11 = arith.constant 0 : index
      %c0_12 = arith.constant 0 : index
      %c0_13 = arith.constant 0 : index
      %13 = vector.load %arg8[%c0_11, %c0_12, %c0_13] : memref<2x8x128xf32, #tpu.memory_space<vmem>>, vector<2x8x128xf32>
      %cst = arith.constant dense<0.000000e+00> : vector<2x8xf32>
      %14 = vector.multi_reduction <add>, %13, %cst [2] : vector<2x8x128xf32> to vector<2x8xf32>
      %cst_14 = arith.constant 3.906250e-03 : f32
      %15 = vector.broadcast %cst_14 : f32 to vector<2x8xf32>
      %16 = arith.mulf %14, %15 : vector<2x8xf32>
      %c0_15 = arith.constant 0 : index
      %c0_16 = arith.constant 0 : index
      %17 = vector.load %arg3[%c0_15, %c0_16] : memref<8x128xf32, #tpu.memory_space<vmem>>, vector<8x128xf32>
      %cst_17 = arith.constant dense<0.000000e+00> : vector<2x128xf32>
      %18 = tpu.matmul %16, %17, %cst_17 {dimension_numbers = #tpu.dot_dimension_numbers<[1], [0], [0], [1], [0, 0, 1, 1], [], []>} : vector<2x8xf32>, vector<8x128xf32>, vector<2x128xf32> -> vector<2x128xf32>
      %c0_18 = arith.constant 0 : index
      %c0_19 = arith.constant 0 : index
      %19 = vector.load %arg4[%c0_18, %c0_19] : memref<1x128xf32, #tpu.memory_space<vmem>>, vector<1x128xf32>
      %20 = vector.broadcast %19 : vector<1x128xf32> to vector<2x128xf32>
      %21 = arith.addf %18, %20 : vector<2x128xf32>
      %cst_20 = arith.constant 0.000000e+00 : f32
      %22 = vector.broadcast %cst_20 : f32 to vector<2x128xf32>
      %23 = arith.maximumf %21, %22 : vector<2x128xf32>
      %c0_21 = arith.constant 0 : index
      %c0_22 = arith.constant 0 : index
      %24 = vector.load %arg5[%c0_21, %c0_22] : memref<128x128xf32, #tpu.memory_space<vmem>>, vector<128x128xf32>
      %cst_23 = arith.constant dense<0.000000e+00> : vector<2x128xf32>
      %25 = tpu.matmul %23, %24, %cst_23 {dimension_numbers = #tpu.dot_dimension_numbers<[1], [0], [0], [1], [0, 0, 1, 1], [], []>} : vector<2x128xf32>, vector<128x128xf32>, vector<2x128xf32> -> vector<2x128xf32>
      %c0_24 = arith.constant 0 : index
      %c0_25 = arith.constant 0 : index
      %26 = vector.load %arg6[%c0_24, %c0_25] : memref<1x128xf32, #tpu.memory_space<vmem>>, vector<1x128xf32>
      %27 = vector.broadcast %26 : vector<1x128xf32> to vector<2x128xf32>
      %28 = arith.addf %25, %27 : vector<2x128xf32>
      %29 = arith.negf %28 : vector<2x128xf32>
      %30 = math.exp %29 : vector<2x128xf32>
      %cst_26 = arith.constant 1.000000e+00 : f32
      %31 = vector.broadcast %cst_26 : f32 to vector<2x128xf32>
      %32 = arith.addf %31, %30 : vector<2x128xf32>
      %33 = arith.divf %31, %32 : vector<2x128xf32>
      %c0_27 = arith.constant 0 : index
      %c0_28 = arith.constant 0 : index
      %c0_29 = arith.constant 0 : index
      %34 = vector.load %arg7[%c0_27, %c0_28, %c0_29] : memref<1x2x128xf32, #tpu.memory_space<vmem>>, vector<1x2x128xf32>
      %35 = vector.shape_cast %34 : vector<1x2x128xf32> to vector<2x128xf32>
      %36 = vector.shape_cast %33 : vector<2x128xf32> to vector<1x2x128xf32>
      tpu.vector_store %arg7[%c0_27, %c0_28, %c0_29], %36 {strides = array<i32>} : memref<1x2x128xf32, #tpu.memory_space<vmem>>, vector<1x2x128xf32>,
    } else {
    }
    return
  }
  func.func @transform_0(%arg0: i32, %arg1: i32) -> (i32, i32, i32) {
    %c0_i32 = arith.constant 0 : i32
    %c0_i32_0 = arith.constant 0 : i32
    return %arg0, %c0_i32, %arg1 : i32, i32, i32
  }
  func.func @transform_1(%arg0: i32, %arg1: i32) -> (i32, i32) {
    %c0_i32 = arith.constant 0 : i32
    %c0_i32_0 = arith.constant 0 : i32
    %c0_i32_1 = arith.constant 0 : i32
    return %c0_i32, %c0_i32_0 : i32, i32
  }
  func.func @transform_2(%arg0: i32, %arg1: i32) -> (i32, i32) {
    %c0_i32 = arith.constant 0 : i32
    %c0_i32_0 = arith.constant 0 : i32
    %c0_i32_1 = arith.constant 0 : i32
    return %c0_i32, %c0_i32_0 : i32, i32
  }
  func.func @transform_3(%arg0: i32, %arg1: i32) -> (i32, i32) {
    %c0_i32 = arith.constant 0 : i32
    %c0_i32_0 = arith.constant 0 : i32
    %c0_i32_1 = arith.constant 0 : i32
    return %c0_i32, %c0_i32_0 : i32, i32
  }
  func.func @transform_4(%arg0: i32, %arg1: i32) -> (i32, i32) {
    %c0_i32 = arith.constant 0 : i32
    %c0_i32_0 = arith.constant 0 : i32
    %c0_i32_1 = arith.constant 0 : i32
    return %c0_i32, %c0_i32_0 : i32, i32
  }
  func.func @transform_5(%arg0: i32, %arg1: i32) -> (i32, i32, i32) {
    %c0_i32 = arith.constant 0 : i32
    %c0_i32_0 = arith.constant 0 : i32
    %c0_i32_1 = arith.constant 0 : i32
    return %arg0, %c0_i32, %c0_i32_0 : i32, i32, i32
  }
}

</mosaic_0001>

<llo_original>
// kernel: tpu_custom_call.1
$region0: #{tpu_custom_call.1}
  #allocation0 [shape = 'u32[]', space=smem, size = 0x4, offset = 0x4, fixed_abs, tag = 'smem constant byte address 0x4 - core index']
  #allocation1 [shape = 'u32[144,128]{1,0:T(1,128)}', space=vmem, size = 0x12000, scoped, tag = 'internal scratch']
  #allocation2 [shape = 'f32[2,8,128]{2,1,0:T(8,128)}', space=vmem, size = 0x2000, scoped, tag = 'scratch operand']
  %s0 = inlined_call_operand.hbm [shape: f32[2,8,256], index: 0, kind: input, shape index: {}]
  %s1 = inlined_call_operand.hbm [shape: f32[8,128], index: 1, kind: input, shape index: {}]
  %s2 = inlined_call_operand.vmem [shape: f32[1,128], index: 2, kind: input, shape index: {}]
  %s3 = inlined_call_operand.hbm [shape: f32[128,128], index: 3, kind: input, shape index: {}]
  %s4 = inlined_call_operand.vmem [shape: f32[1,128], index: 4, kind: input, shape index: {}]
  %s5 = inlined_call_operand.hbm [shape: f32[1,2,128], index: 5, kind: output, shape index: {}]
  %s6 = sld [smem:[#allocation0]]
  $region50: #{tpu_custom_call.1} parent=0
    _
  %s8 = ssub.s32 1, %s6
  %s9 = scalar_select 0, %s8, %s6
  $region1: #{tpu_custom_call.1} parent=0
    #allocation3 [shape = 'u8[16384]{0}', space=vmem, size = 0x4000, scoped, tag = 'input window, operand 0, single buffered']
    #allocation4 [shape = 's32[1]{0}', space=sflag, size = 0x4, scoped, tag = 'scoped memory for tpu_custom_call.1']
    #allocation5 [shape = 's32[1]{0}', space=sflag, size = 0x4, scoped, tag = 'scoped memory for tpu_custom_call.1']
    #allocation6 [shape = 'u8[4096]{0}', space=vmem, size = 0x1000, scoped, tag = 'input window, operand 1, single buffered']
    #allocation7 [shape = 's32[1]{0}', space=sflag, size = 0x4, scoped, tag = 'scoped memory for tpu_custom_call.1']
    #allocation8 [shape = 'u8[65536]{0}', space=vmem, size = 0x10000, scoped, tag = 'input window, operand 3, single buffered']
    #allocation9 [shape = 'u8[1024]{0}', space=vmem, size = 0x400, scoped, tag = 'output window, operand 0, single buffered']
    %10 = vsyncpa [#allocation4], 0
    %11 = vsyncpa [#allocation7], 0
    %12 = vsyncpa [#allocation5], 0
    // Predicated region
    $region2: #{tpu_custom_call.1} parent=1 // pred_check
      _
    $region3: #{tpu_custom_call.1} parent=1 // pred_check_branch
      %14 = sbr.rel (0) target = $region5
    $region4: #{tpu_custom_call.1} parent=1 // pred_region
      %s16 = ssub.s32 512, 512
      %17 = vsyncadd [#allocation4], %s16
      %s18 = sshll.u32 [#allocation3], 4
      %s19 = int_to_ptr.vmem [resolvable:$true] %s18
      %24 = dma.hbm_to_vmem [thread:$0]  %s0, 512, %s19, [#allocation4], 256, 256, 16
    $region5: #{tpu_custom_call.1} parent=1 // pred_fallthru
      _
    // Predicated region
    $region6: #{tpu_custom_call.1} parent=1 // pred_check
      _
    $region7: #{tpu_custom_call.1} parent=1 // pred_check_branch
      %26 = sbr.rel (0) target = $region9
    $region8: #{tpu_custom_call.1} parent=1 // pred_region
      %s28 = ssub.s32 128, 128
      %29 = vsyncadd [#allocation7], %s28
      %s31 = sshll.u32 [#allocation6], 4
      %s32 = int_to_ptr.vmem [resolvable:$true] %s31
      %34 = dma.hbm_to_vmem [thread:$0]  %s1, 128, %s32, [#allocation7]
    $region9: #{tpu_custom_call.1} parent=1 // pred_fallthru
      _
    // Predicated region
    $region10: #{tpu_custom_call.1} parent=1 // pred_check
      _
    $region11: #{tpu_custom_call.1} parent=1 // pred_check_branch
      %36 = sbr.rel (0) target = $region13
    $region12: #{tpu_custom_call.1} parent=1 // pred_region
      _
    $region13: #{tpu_custom_call.1} parent=1 // pred_fallthru
      _
    // Predicated region
    $region14: #{tpu_custom_call.1} parent=1 // pred_check
      _
    $region15: #{tpu_custom_call.1} parent=1 // pred_check_branch
      %38 = sbr.rel (0) target = $region17
    $region16: #{tpu_custom_call.1} parent=1 // pred_region
      %s40 = ssub.s32 2048, 2048
      %41 = vsyncadd [#allocation7], %s40
      %s42 = sshll.u32 [#allocation8], 4
      %s43 = int_to_ptr.vmem [resolvable:$true] %s42
      %48 = dma.hbm_to_vmem [thread:$0]  %s3, 2048, %s43, [#allocation7], 128, 128, 8
    $region17: #{tpu_custom_call.1} parent=1 // pred_fallthru
      _
    // Predicated region
    $region18: #{tpu_custom_call.1} parent=1 // pred_check
      _
    $region19: #{tpu_custom_call.1} parent=1 // pred_check_branch
      %50 = sbr.rel (0) target = $region21
    $region20: #{tpu_custom_call.1} parent=1 // pred_region
      _
    $region21: #{tpu_custom_call.1} parent=1 // pred_fallthru
      _
    // Predicated region
    $region22: #{tpu_custom_call.1} parent=1 // pred_check
      _
    $region23: #{tpu_custom_call.1} parent=1 // pred_check_branch
      %52 = sbr.rel (0) target = $region25
    $region24: #{tpu_custom_call.1} parent=1 // pred_region
      %53 = dma.done [#allocation4], 512
    $region25: #{tpu_custom_call.1} parent=1 // pred_fallthru
      _
    // Predicated region
    $region26: #{tpu_custom_call.1} parent=1 // pred_check
      _
    $region27: #{tpu_custom_call.1} parent=1 // pred_check_branch
      %55 = sbr.rel (0) target = $region29
    $region28: #{tpu_custom_call.1} parent=1 // pred_region
      %56 = dma.done [#allocation7], 128
    $region29: #{tpu_custom_call.1} parent=1 // pred_fallthru
      _
    // Predicated region
    $region30: #{tpu_custom_call.1} parent=1 // pred_check
      _
    $region31: #{tpu_custom_call.1} parent=1 // pred_check_branch
      %58 = sbr.rel (0) target = $region33
    $region32: #{tpu_custom_call.1} parent=1 // pred_region
      %59 = dma.done [#allocation7], 2048
    $region33: #{tpu_custom_call.1} parent=1 // pred_fallthru
      _
    %p60 = scmp.eq.s32.totalorder 0, 0
    // Predicated region
    $region34: #{tpu_custom_call.1} parent=1 // pred_check
      %p61 = pneg %p60
    $region35: #{tpu_custom_call.1} parent=1 // pred_check_branch
      %63 = sbr.rel (%p61) target = $region37
    $region36: #{tpu_custom_call.1} parent=1 // pred_region
      %64 = vst [vmem:[#allocation2] sm:$0xff] 0.0
      %65 = vst [vmem:[#allocation2 + $0x8] sm:$0xff] 0.0
    $region37: #{tpu_custom_call.1} parent=1 // pred_fallthru
      _
    %v66 = vld [vmem:[#allocation3] sm:$0xff]
    %v67 = vld [vmem:[#allocation3 + $0x8] sm:$0xff]
    %v68 = vld [vmem:[#allocation3 + $0x10] sm:$0xff]
    %v69 = vld [vmem:[#allocation3 + $0x18] sm:$0xff]
    %v70 = vadd.f32 %v66, %v67
    %v71 = vadd.f32 %v68, %v69
    %v72 = vld [vmem:[#allocation2] sm:$0xff]
    %v73 = vld [vmem:[#allocation2 + $0x8] sm:$0xff]
    %v74 = vadd.f32 %v72, %v70
    %v75 = vadd.f32 %v73, %v71
    %76 = vst [vmem:[#allocation2] sm:$0xff] %v74
    %77 = vst [vmem:[#allocation2 + $0x8] sm:$0xff] %v75
    // Predicated region
    $region38: #{tpu_custom_call.1} parent=1 // pred_check
      %p78 = pneg %p60
    $region39: #{tpu_custom_call.1} parent=1 // pred_check_branch
      %80 = sbr.rel (%p78) target = $region41
    $region40: #{tpu_custom_call.1} parent=1 // pred_region
      %v81 = vld [vmem:[#allocation2] sm:$0xff]
      %v82 = vld [vmem:[#allocation2 + $0x8] sm:$0xff]
      %83 = vadd.xlane.f32.xlu0 %v81
      %v84 = vpop.xlane.xlu0 %83
      %85 = vadd.xlane.f32.xlu0 %v82
      %v86 = vpop.xlane.xlu0 %85
      %v87 = vmul.f32 %v84, 0.00390625
      %v88 = vmul.f32 %v86, 0.00390625
      %v89 = vld [vmem:[#allocation6] sm:$0xff]
      %v90 = vld [vmem:[%s2] sm:$0x1]
      %v92 = vlaneseq
      %v93 = vshrl.u32 %v92, 7
      %v94 = vsub.s32 0, %v93
      %v95 = vrot.slane %v90, %v94
      %v99 = vlaneseq
      %v100 = vand.u32 %v99, 127
      %v101 = vlaneseq
      %v102 = vshrl.u32 %v101, 7
      %v103 = vsub.s32 %v100, %v102
      %v104 = vrot.slane %v87, %v103
      %v105 = vlaneseq
      %v106 = vshrl.u32 %v105, 7
      %v107 = vsub.s32 %v100, %v106
      %v108 = vrot.slane %v88, %v107
      %vm109 = vcmask 1041409
      %v110 = vsel %vm109, %v108, %v104
      %vm111 = vcmask 64512
      %v112 = vsel %vm111, %v110, 0
      %114 = vmatprep.subr.mxu0 0.0
      %115 = vmatpush1.msra.mxu0 0.0
      %116 = vmatprep.subr.mxu0 0.0
      %117 = vmatpush1.msra.mxu0 0.0
      %118 = vmatprep.subr.mxu0 0.0
      %119 = vmatpush1.msra.mxu0 0.0
      %120 = vmatprep.subr.mxu0 0.0
      %121 = vmatpush1.msra.mxu0 0.0
      %122 = vmatprep.subr.mxu0 0.0
      %123 = vmatpush1.msra.mxu0 0.0
      %124 = vmatprep.subr.mxu0 0.0
      %125 = vmatpush1.msra.mxu0 0.0
      %126 = vmatprep.subr.mxu0 0.0
      %127 = vmatpush1.msra.mxu0 0.0
      %128 = vmatprep.subr.mxu0 0.0
      %129 = vmatpush1.msra.mxu0 0.0
      %130 = vmatprep.subr.mxu0 0.0
      %131 = vmatpush1.msra.mxu0 0.0
      %132 = vmatprep.subr.mxu0 0.0
      %133 = vmatpush1.msra.mxu0 0.0
      %134 = vmatprep.subr.mxu0 0.0
      %135 = vmatpush1.msra.mxu0 0.0
      %136 = vmatprep.subr.mxu0 0.0
      %137 = vmatpush1.msra.mxu0 0.0
      %138 = vmatprep.subr.mxu0 0.0
      %139 = vmatpush1.msra.mxu0 0.0
      %140 = vmatprep.subr.mxu0 0.0
      %141 = vmatpush1.msra.mxu0 0.0
      %142 = vmatprep.subr.mxu0 0.0
      %143 = vmatpush1.msra.mxu0 0.0
      %144 = vmatprep.subr.mxu0 0.0
      %145 = vmatpush1.msra.mxu0 %v89
      %146 = vmatprep.subr.mxu0 0.0
      %147 = vmatpush2.msra.mxu0 0.0
      %148 = vmatprep.subr.mxu0 0.0
      %149 = vmatpush2.msra.mxu0 0.0
      %150 = vmatprep.subr.mxu0 0.0
      %151 = vmatpush2.msra.mxu0 0.0
      %152 = vmatprep.subr.mxu0 0.0
      %153 = vmatpush2.msra.mxu0 0.0
      %154 = vmatprep.subr.mxu0 0.0
      %155 = vmatpush2.msra.mxu0 0.0
      %156 = vmatprep.subr.mxu0 0.0
      %157 = vmatpush2.msra.mxu0 0.0
      %158 = vmatprep.subr.mxu0 0.0
      %159 = vmatpush2.msra.mxu0 0.0
      %160 = vmatprep.subr.mxu0 0.0
      %161 = vmatpush2.msra.mxu0 0.0
      %162 = vmatprep.subr.mxu0 0.0
      %163 = vmatpush2.msra.mxu0 0.0
      %164 = vmatprep.subr.mxu0 0.0
      %165 = vmatpush2.msra.mxu0 0.0
      %166 = vmatprep.subr.mxu0 0.0
      %167 = vmatpush2.msra.mxu0 0.0
      %168 = vmatprep.subr.mxu0 0.0
      %169 = vmatpush2.msra.mxu0 0.0
      %170 = vmatprep.subr.mxu0 0.0
      %171 = vmatpush2.msra.mxu0 0.0
      %172 = vmatprep.subr.mxu0 0.0
      %173 = vmatpush2.msra.mxu0 0.0
      %174 = vmatprep.subr.mxu0 0.0
      %175 = vmatpush2.msra.mxu0 0.0
      %176 = vmatprep.subr.mxu0 0.0
      %177 = vmatpush2.msra.mxu0 0.0
      %178 = vmatprep.mubr.f32.mxu0 0.0
      %179 = vmatmul.mubr.f32.gmra.mxu0 %v112
      %v180 = vpop.f32.mrf.mxu0
      %v181 = vadd.f32 %v95, %v180
      %v182 = vpop.f32.mrf.mxu0
      %183 = vdwg.mxu0
      %v184 = vmax.f32 %v181, 0.0
      %v185 = vld [vmem:[#allocation8] sm:$0xff]
      %v186 = vld [vmem:[#allocation8 + $0x8] sm:$0xff]
      %v187 = vld [vmem:[#allocation8 + $0x10] sm:$0xff]
      %v188 = vld [vmem:[#allocation8 + $0x18] sm:$0xff]
      %v189 = vld [vmem:[#allocation8 + $0x20] sm:$0xff]
      %v190 = vld [vmem:[#allocation8 + $0x28] sm:$0xff]
      %v191 = vld [vmem:[#allocation8 + $0x30] sm:$0xff]
      %v192 = vld [vmem:[#allocation8 + $0x38] sm:$0xff]
      %v193 = vld [vmem:[#allocation8 + $0x40] sm:$0xff]
      %v194 = vld [vmem:[#allocation8 + $0x48] sm:$0xff]
      %v195 = vld [vmem:[#allocation8 + $0x50] sm:$0xff]
      %v196 = vld [vmem:[#allocation8 + $0x58] sm:$0xff]
      %v197 = vld [vmem:[#allocation8 + $0x60] sm:$0xff]
      %v198 = vld [vmem:[#allocation8 + $0x68] sm:$0xff]
      %v199 = vld [vmem:[#allocation8 + $0x70] sm:$0xff]
      %v200 = vld [vmem:[#allocation8 + $0x78] sm:$0xff]
      %v201 = vld [vmem:[%s4] sm:$0x1]
      %v203 = vlaneseq
      %v204 = vshrl.u32 %v203, 7
      %v205 = vsub.s32 0, %v204
      %v206 = vrot.slane %v201, %v205
      %208 = vmatprep.subr.mxu0 0.0
      %209 = vmatpush1.msra.mxu0 %v200
      %210 = vmatprep.subr.mxu0 0.0
      %211 = vmatpush1.msra.mxu0 %v199
      %212 = vmatprep.subr.mxu0 0.0
      %213 = vmatpush1.msra.mxu0 %v198
      %214 = vmatprep.subr.mxu0 0.0
      %215 = vmatpush1.msra.mxu0 %v197
      %216 = vmatprep.subr.mxu0 0.0
      %217 = vmatpush1.msra.mxu0 %v196
      %218 = vmatprep.subr.mxu0 0.0
      %219 = vmatpush1.msra.mxu0 %v195
      %220 = vmatprep.subr.mxu0 0.0
      %221 = vmatpush1.msra.mxu0 %v194
      %222 = vmatprep.subr.mxu0 0.0
      %223 = vmatpush1.msra.mxu0 %v193
      %224 = vmatprep.subr.mxu0 0.0
      %225 = vmatpush1.msra.mxu0 %v192
      %226 = vmatprep.subr.mxu0 0.0
      %227 = vmatpush1.msra.mxu0 %v191
      %228 = vmatprep.subr.mxu0 0.0
      %229 = vmatpush1.msra.mxu0 %v190
      %230 = vmatprep.subr.mxu0 0.0
      %231 = vmatpush1.msra.mxu0 %v189
      %232 = vmatprep.subr.mxu0 0.0
      %233 = vmatpush1.msra.mxu0 %v188
      %234 = vmatprep.subr.mxu0 0.0
      %235 = vmatpush1.msra.mxu0 %v187
      %236 = vmatprep.subr.mxu0 0.0
      %237 = vmatpush1.msra.mxu0 %v186
      %238 = vmatprep.subr.mxu0 0.0
      %239 = vmatpush1.msra.mxu0 %v185
      %240 = vmatprep.subr.mxu0 0.0
      %241 = vmatpush2.msra.mxu0 0.0
      %242 = vmatprep.subr.mxu0 0.0
      %243 = vmatpush2.msra.mxu0 0.0
      %244 = vmatprep.subr.mxu0 0.0
      %245 = vmatpush2.msra.mxu0 0.0
      %246 = vmatprep.subr.mxu0 0.0
      %247 = vmatpush2.msra.mxu0 0.0
      %248 = vmatprep.subr.mxu0 0.0
      %249 = vmatpush2.msra.mxu0 0.0
      %250 = vmatprep.subr.mxu0 0.0
      %251 = vmatpush2.msra.mxu0 0.0
      %252 = vmatprep.subr.mxu0 0.0
      %253 = vmatpush2.msra.mxu0 0.0
      %254 = vmatprep.subr.mxu0 0.0
      %255 = vmatpush2.msra.mxu0 0.0
      %256 = vmatprep.subr.mxu0 0.0
      %257 = vmatpush2.msra.mxu0 0.0
      %258 = vmatprep.subr.mxu0 0.0
      %259 = vmatpush2.msra.mxu0 0.0
      %260 = vmatprep.subr.mxu0 0.0
      %261 = vmatpush2.msra.mxu0 0.0
      %262 = vmatprep.subr.mxu0 0.0
      %263 = vmatpush2.msra.mxu0 0.0
      %264 = vmatprep.subr.mxu0 0.0
      %265 = vmatpush2.msra.mxu0 0.0
      %266 = vmatprep.subr.mxu0 0.0
      %267 = vmatpush2.msra.mxu0 0.0
      %268 = vmatprep.subr.mxu0 0.0
      %269 = vmatpush2.msra.mxu0 0.0
      %270 = vmatprep.subr.mxu0 0.0
      %271 = vmatpush2.msra.mxu0 0.0
      %272 = vmatprep.mubr.f32.mxu0 0.0
      %273 = vmatmul.mubr.f32.gmra.mxu0 %v184
      %v274 = vpop.f32.mrf.mxu0
      %v275 = vadd.f32 %v206, %v274
      %v276 = vpop.f32.mrf.mxu0
      %277 = vdwg.mxu0
      %v278 = vxor.u32 %v275, 2147483648
      %v279 = vmul.f32 %v278, 1.442695
      %v280 = vpow.pop %v279
      %v281 = vadd.f32 %v280, 1.0
      %v282 = vrcp.pop %v281
      %v283 = vmul.f32 1.0, %v282
      %284 = vst [vmem:[#allocation9] sm:$0x3] %v283
    $region41: #{tpu_custom_call.1} parent=1 // pred_fallthru
      _
    // Predicated region
    $region42: #{tpu_custom_call.1} parent=1 // pred_check
      _
    $region43: #{tpu_custom_call.1} parent=1 // pred_check_branch
      %286 = sbr.rel (0) target = $region45
    $region44: #{tpu_custom_call.1} parent=1 // pred_region
      %s288 = ssub.s32 32, 32
      %289 = vsyncadd [#allocation5], %s288
      %s291 = sshll.u32 [#allocation9], 4
      %s292 = int_to_ptr.vmem [resolvable:$true] %s291
      %294 = dma.vmem_to_hbm [thread:$0]  %s292, 32, %s5, [#allocation5]
    $region45: #{tpu_custom_call.1} parent=1 // pred_fallthru
      _
    // Predicated region
    $region46: #{tpu_custom_call.1} parent=1 // pred_check
      _
    $region47: #{tpu_custom_call.1} parent=1 // pred_check_branch
      %296 = sbr.rel (0) target = $region49
    $region48: #{tpu_custom_call.1} parent=1 // pred_region
      %297 = dma.done [#allocation5], 32
    $region49: #{tpu_custom_call.1} parent=1 // pred_fallthru
      _
    %298 = vsyncpa [#allocation4], 1
    %299 = vsyncpa [#allocation7], 1
    %300 = vsyncpa [#allocation5], 1

</llo_original>
